<compile_context>
chip_gen: v7x
topology: tpu7x:2x2x1
jax: 0.10.0
libtpu: 0.0.40
codegen_flags: <defaults>
</compile_context>

<pallas_src>
import math

import jax
import jax.numpy as jnp
from jax.experimental import pallas as pl
from jax.experimental.pallas import tpu as pltpu


# ---------------------------------------------------------------------------
# Sinusoidal table (same math as the PyTorch __init__).
# ---------------------------------------------------------------------------
def make_positional_encoding(d_model: int, max_len: int, dtype=jnp.float32) -> jnp.ndarray:
    position = jnp.arange(max_len, dtype=jnp.float32)[:, None]                # (max_len, 1)
    div_term = jnp.exp(
        jnp.arange(0, d_model, 2, dtype=jnp.float32) * (-math.log(10000.0) / d_model)
    )                                                                         # (ceil(d/2),)
    angles = position * div_term                                              # (max_len, ceil(d/2))
    pe = jnp.zeros((max_len, d_model), dtype=jnp.float32)
    pe = pe.at[:, 0::2].set(jnp.sin(angles))
    # There are exactly d_model // 2 odd (cos) columns.  Identical to the
    # PyTorch reference for even d_model; well-defined for odd d_model too.
    pe = pe.at[:, 1::2].set(jnp.cos(angles[:, : d_model // 2]))
    return pe.astype(dtype)


# ---------------------------------------------------------------------------
# Kernel body: pure VPU add.  On the tiled 3-D path x/pe tiles have identical
# shapes (no broadcast emitted); on the flattened small-D path pe is (1, tn)
# and broadcasts only over sublanes (cheap, and that path runs few steps).
# ---------------------------------------------------------------------------
def _pe_add_kernel(x_ref, pe_ref, o_ref):
    o_ref[...] = x_ref[...] + pe_ref[...]


# Conservative per-step VMEM budget: double-buffered x + out + pe tiles.
# Leaves headroom on every chip (v5e 16 MiB scoped default, v7x 64 MiB physical).
_TILE_VMEM_BUDGET = 16 * 1024 * 1024
_VMEM_LIMIT_BYTES = 32 * 1024 * 1024


def _choose_seq_tile(S: int, D: int, itemsize: int, target: int) -> int:
    # ~6 tiles resident per step (2 buffers each for x, out, pe).
    max_rows = max(8, _TILE_VMEM_BUDGET // (6 * D * itemsize))
    ts = min(S, target, max_rows)
    if ts < S:
        ts = max(8, (ts // 8) * 8)   # multiple of 8 unless it spans the full extent
    return ts


def _choose_flat_tile(B: int, N: int, itemsize: int) -> int:
    if N % 128 != 0:
        return N                     # full extent is always a legal block
    denom = 2 * (2 * B + 1) * itemsize   # 2 buffers * (x + out + pe) rows per lane-column
    max_cols = max(128, _TILE_VMEM_BUDGET // denom)
    tn = min(N, max_cols)
    return max(128, (tn // 128) * 128)   # keep the store lane-dense


def positional_encoding_forward(x: jnp.ndarray, pe: jnp.ndarray, *, seq_tile_target: int = 512) -> jnp.ndarray:
    """x: (B, S, D); pe: (max_len, D) with max_len >= S. Returns x + pe[:S]."""
    B, S, D = x.shape
    if pe.shape[0] < S:
        raise ValueError(f"max_len={pe.shape[0]} < seq_len={S}")
    # Static slice + dtype match (bf16 x => bf16 add, halving HBM traffic).
    pe_s = pe[:S, :].astype(x.dtype)
    itemsize = jnp.dtype(x.dtype).itemsize

    # NOTE: for tiny shapes or when this add can fuse into an adjacent XLA op,
    # a plain `x + pe_s[None]` may beat an unfusable custom call; the Pallas
    # path below is the production (large B*S*D) path.

    if D % 128 == 0:
        # ------------- Path A: D already lane-dense; tile the sequence dim. ----
        ts = _choose_seq_tile(S, D, itemsize, seq_tile_target)
        grid = (pl.cdiv(S, ts), B)   # batch innermost -> pe tile stays resident
        return pl.pallas_call(
            _pe_add_kernel,
            out_shape=jax.ShapeDtypeStruct((B, S, D), x.dtype),
            grid=grid,
            in_specs=[
                pl.BlockSpec((pl.Squeezed(), ts, D), lambda s, b: (b, s, 0)),  # x tile
                pl.BlockSpec((ts, D), lambda s, b: (s, 0)),                    # pe tile (b-invariant)
            ],
            out_specs=pl.BlockSpec((pl.Squeezed(), ts, D), lambda s, b: (b, s, 0)),
            input_output_aliases={0: 0},   # x += pe; donate x to run in place
            compiler_params=pltpu.CompilerParams(
                dimension_semantics=("parallel", "parallel"),   # v7x megacore split
                vmem_limit_bytes=_VMEM_LIMIT_BYTES,
            ),
        )(x, pe_s)

    # ------------- Path B: D < 128 (not lane-aligned).  Flatten (S, D) so the --
    # ------------- last dim is a large multiple of 128 -> unmasked vst.        --
    N = S * D
    x2 = x.reshape(B, N)
    pe2 = pe_s.reshape(1, N)
    tn = _choose_flat_tile(B, N, itemsize)
    out2 = pl.pallas_call(
        _pe_add_kernel,
        out_shape=jax.ShapeDtypeStruct((B, N), x.dtype),
        grid=(pl.cdiv(N, tn),),
        in_specs=[
            pl.BlockSpec((B, tn), lambda n: (0, n)),   # full batch as sublane dim
            pl.BlockSpec((1, tn), lambda n: (0, n)),   # pe row, broadcast over sublanes
        ],
        out_specs=pl.BlockSpec((B, tn), lambda n: (0, n)),
        input_output_aliases={0: 0},
        compiler_params=pltpu.CompilerParams(
            dimension_semantics=("parallel",),
            vmem_limit_bytes=_VMEM_LIMIT_BYTES,
        ),
    )(x2, pe2)
    return out2.reshape(B, S, D)


if __name__ == "__main__":
    fwd = jax.jit(positional_encoding_forward, static_argnames=("seq_tile_target",))

    # --- Demo 1: small shapes implied by the module (D < 128 -> lane-dense flat path).
    B, S, D, MAX_LEN = 2, 8, 32, 16
    key = jax.random.PRNGKey(0)
    x = jax.random.normal(key, (B, S, D), dtype=jnp.float32)
    pe = make_positional_encoding(D, MAX_LEN)

    out = jax.block_until_ready(fwd(x, pe))
    ref = x + pe[:S, :][None, :, :]
    assert out.shape == (B, S, D)
    assert jnp.allclose(out, ref, atol=1e-6), "flattened-path mismatch vs reference"

    # --- Demo 2: lane-dense D (multiple of 128) exercising the tiled 3-D path
    #     with a small sequence tile so the grid has multiple (s, b) steps.
    B2, S2, D2, MAX_LEN2 = 2, 24, 128, 32
    x2 = jax.random.normal(jax.random.PRNGKey(0), (B2, S2, D2), dtype=jnp.float32)
    pe2 = make_positional_encoding(D2, MAX_LEN2)
    out2 = jax.block_until_ready(fwd(x2, pe2, seq_tile_target=8))
    ref2 = x2 + pe2[:S2, :][None, :, :]
    assert jnp.allclose(out2, ref2, atol=1e-6), "tiled-path mismatch vs reference"

    print("KERNEL_OK")
</pallas_src>

<mosaic_0001>
module attributes {stable_mosaic.version = 11 : i64} {
  func.func @_pe_add_kernel(%arg0: i32, %arg1: memref<2x256xf32, #tpu.memory_space<vmem>>, %arg2: memref<1x256xf32, #tpu.memory_space<vmem>>, %arg3: memref<2x256xf32, #tpu.memory_space<vmem>>) attributes {dimension_semantics = [#tpu.dimension_semantics<parallel>], iteration_bounds = array<i64: 1>, scalar_prefetch = 0 : i64, scratch_operands = 0 : i64, tpu.core_type = #tpu.core_type<tc>, window_params = [{transform_indices = @transform_0, window_bounds = array<i64: 2, 256>}, {transform_indices = @transform_1, window_bounds = array<i64: 1, 256>}, {transform_indices = @transform_2, window_bounds = array<i64: 2, 256>}]} {
    %c0 = arith.constant 0 : index
    %c0_0 = arith.constant 0 : index
    %0 = vector.load %arg1[%c0, %c0_0] : memref<2x256xf32, #tpu.memory_space<vmem>>, vector<2x256xf32>
    %c0_1 = arith.constant 0 : index
    %c0_2 = arith.constant 0 : index
    %1 = vector.load %arg2[%c0_1, %c0_2] : memref<1x256xf32, #tpu.memory_space<vmem>>, vector<1x256xf32>
    %2 = vector.broadcast %1 : vector<1x256xf32> to vector<2x256xf32>
    %3 = arith.addf %0, %2 : vector<2x256xf32>
    %c0_3 = arith.constant 0 : index
    %c0_4 = arith.constant 0 : index
    %4 = vector.load %arg3[%c0_3, %c0_4] : memref<2x256xf32, #tpu.memory_space<vmem>>, vector<2x256xf32>
    tpu.vector_store %arg3[%c0_3, %c0_4], %3 {strides = array<i32>} : memref<2x256xf32, #tpu.memory_space<vmem>>, vector<2x256xf32>,
    return
  }
  func.func @transform_0(%arg0: i32) -> (i32, i32) {
    %c0_i32 = arith.constant 0 : i32
    %c0_i32_0 = arith.constant 0 : i32
    return %c0_i32, %arg0 : i32, i32
  }
  func.func @transform_1(%arg0: i32) -> (i32, i32) {
    %c0_i32 = arith.constant 0 : i32
    %c0_i32_0 = arith.constant 0 : i32
    return %c0_i32, %arg0 : i32, i32
  }
  func.func @transform_2(%arg0: i32) -> (i32, i32) {
    %c0_i32 = arith.constant 0 : i32
    %c0_i32_0 = arith.constant 0 : i32
    return %c0_i32, %arg0 : i32, i32
  }
}

</mosaic_0001>

<llo_original>
// kernel: positional_encoding_forward.1
$region0: #{positional_encoding_forward.1}
  #allocation0 [shape = 'u32[]', space=smem, size = 0x4, offset = 0x4, fixed_abs, tag = 'smem constant byte address 0x4 - core index']
  #allocation1 [shape = 'u32[144,128]{1,0:T(1,128)}', space=vmem, size = 0x12000, scoped, tag = 'internal scratch']
  %s0 = inlined_call_operand.vmem [shape: f32[2,256], index: 0, kind: input, shape index: {}, may-alias: {0,2}]
  %s1 = inlined_call_operand.vmem [shape: f32[1,256], index: 1, kind: input, shape index: {}]
  %s2 = inlined_call_operand.vmem [shape: f32[2,256], index: 2, kind: output, shape index: {}, may-alias: {0,2}]
  %s3 = sld [smem:[#allocation0]]
  $region18: #{positional_encoding_forward.1} parent=0
    _
  %s5 = ssub.s32 1, %s3
  %s6 = scalar_select 0, %s5, %s3
  // Predicated region
  $region2: #{positional_encoding_forward.1} parent=0 // pred_check
    _
  $region3: #{positional_encoding_forward.1} parent=0 // pred_check_branch
    %8 = sbr.rel (0) target = $region5
  $region4: #{positional_encoding_forward.1} parent=0 // pred_region
    _
  $region5: #{positional_encoding_forward.1} parent=0 // pred_fallthru
    _
  // Predicated region
  $region6: #{positional_encoding_forward.1} parent=0 // pred_check
    _
  $region7: #{positional_encoding_forward.1} parent=0 // pred_check_branch
    %10 = sbr.rel (0) target = $region9
  $region8: #{positional_encoding_forward.1} parent=0 // pred_region
    _
  $region9: #{positional_encoding_forward.1} parent=0 // pred_fallthru
    _
  %v11 = vld [vmem:[%s0] sm:$0xf]
  %v12 = vld [vmem:[%s1] sm:$0x3]
  %v14 = vlaneseq
  %v15 = vshrl.u32 %v14, 7
  %v16 = vsub.s32 0, %v15
  %v17 = vrot.slane %v12, %v16
  %v18 = vlaneseq
  %v19 = vshrl.u32 %v18, 7
  %v20 = vsub.s32 1, %v19
  %v21 = vrot.slane %v12, %v20
  %v22 = vcombine.low %v17, %v21
  %v24 = vunpack.c.l.s4 1983009808
  %v25 = vunpack.c.0.s8 %v24
  %v26 = vlaneseq
  %v27 = vshrl.u32 %v26, 7
  %v28 = vsub.s32 %v25, %v27
  %v29 = vrot.slane %v22, %v28
  %v31 = vadd.f32 %v11, %v29
  %32 = vst [vmem:[%s2] sm:$0xf] %v31
  // Predicated region
  $region10: #{positional_encoding_forward.1} parent=0 // pred_check
    _
  $region11: #{positional_encoding_forward.1} parent=0 // pred_check_branch
    %34 = sbr.rel (0) target = $region13
  $region12: #{positional_encoding_forward.1} parent=0 // pred_region
    _
  $region13: #{positional_encoding_forward.1} parent=0 // pred_fallthru
    _
  // Predicated region
  $region14: #{positional_encoding_forward.1} parent=0 // pred_check
    _
  $region15: #{positional_encoding_forward.1} parent=0 // pred_check_branch
    %36 = sbr.rel (0) target = $region17
  $region16: #{positional_encoding_forward.1} parent=0 // pred_region
    _
  $region17: #{positional_encoding_forward.1} parent=0 // pred_fallthru
    _

</llo_original>
